<compile_context>
chip_gen: v5e
topology: v5e:2x2
jax: 0.10.0
libtpu: 0.0.40
codegen_flags: <defaults>
</compile_context>

<pallas_src>
import jax
import jax.numpy as jnp
from jax.experimental import pallas as pl
from jax.experimental.pallas import tpu as pltpu


def _make_glu_kernel(C, Bt, use_mxu):
    """Kernel body for a (Bt, C, T) tile (Bt == 1 -> squeezed 2-D (C, T) refs)."""

    def _one(x, w_ref, b_ref):
        # x: (C, T) input tile -> (C, T) f32 GLU output (lin * sigmoid(x)).
        if use_mxu:
            lin = jnp.dot(w_ref[...], x, preferred_element_type=jnp.float32)
            lin = lin + b_ref[...]
        else:
            # Tiny C: C rank-1 broadcast FMAs on the VPU -- avoids MXU
            # issue/drain latency and (8,128) padding of a tiny CxC operand.
            # Row broadcasts are hoisted out of the accumulation chain.
            # TODO(synk): a stride-0 sublane-broadcast vld
            # (x_ref[pl.ds(ci, C, stride=0), :]) would move these broadcasts
            # into the load slot if VALU/XLU ever becomes the critical unit.
            # TODO(synk): for C below sublane packing (C<8 f32 / C<16 bf16) a
            # (C, S, 128) repacking would avoid wasting sublanes per vreg.
            xf = x.astype(jnp.float32)
            w = w_ref[...]
            rows = [jnp.broadcast_to(xf[ci:ci + 1, :], xf.shape) for ci in range(C)]
            lin = jnp.broadcast_to(b_ref[...], xf.shape)
            for ci in range(C):
                lin = lin + w[:, ci:ci + 1] * rows[ci]
        gate = jax.nn.sigmoid(x.astype(jnp.float32))
        return lin * gate

    if Bt == 1:
        def kernel(x_ref, w_ref, b_ref, o_ref):
            # x_ref/o_ref: (C, T); w_ref: (C, C); b_ref: (C, 1)
            o_ref[...] = _one(x_ref[...], w_ref, b_ref).astype(o_ref.dtype)
        return kernel

    if use_mxu:
        def kernel(x_ref, w_ref, b_ref, o_ref):
            # x_ref/o_ref: (Bt, C, T).  Per-batch (C,C)x(C,T) matmuls keep the
            # MXU fed without a cross-sublane transpose of the result.
            if Bt <= 8:
                for bb in range(Bt):
                    o_ref[bb] = _one(x_ref[bb], w_ref, b_ref).astype(o_ref.dtype)
            else:
                def body(bb, carry):
                    o_ref[bb] = _one(x_ref[bb], w_ref, b_ref).astype(o_ref.dtype)
                    return carry
                jax.lax.fori_loop(0, Bt, body, 0)
        return kernel

    def kernel(x_ref, w_ref, b_ref, o_ref):
        # Small C, batch-blocked tile: vectorize the rank-1 FMAs over (Bt,C,T).
        xf = x_ref[...].astype(jnp.float32)
        w = w_ref[...]
        lin = jnp.broadcast_to(b_ref[...][None, :, :], xf.shape)
        for ci in range(C):
            lin = lin + w[None, :, ci:ci + 1] * xf[:, ci:ci + 1, :]
        o_ref[...] = (lin * jax.nn.sigmoid(xf)).astype(o_ref.dtype)
    return kernel


def _round_down_to_128(v):
    return max(128, (int(v) // 128) * 128)


def glu_pallas(x_nchw, w, b, *, target_tile_bytes=2 << 20):
    """GLU forward.

    x_nchw: (B, C, H, W); w: (C, C) torch convention (out, in); b: (C,).
    Returns (B, C, H, W) in x's dtype, matching the PyTorch module.
    """
    B, C, H, W = x_nchw.shape
    HW = H * W
    dtype = x_nchw.dtype
    itemsize = jnp.dtype(dtype).itemsize

    # Dtype-aware MXU/VPU split.
    use_mxu = C > (32 if itemsize <= 2 else 16)

    w_dtype = dtype if use_mxu else jnp.float32
    w_k = jnp.asarray(w, w_dtype)
    b_k = jnp.asarray(b, jnp.float32).reshape(C, 1)

    # Generation-aware VMEM capacity (64 MiB v7x, 128 MiB v5e/v6e).
    try:
        vmem_cap = int(pltpu.get_tpu_info().vmem_capacity_bytes)
    except Exception:  # conservative default = v7x
        vmem_cap = 64 << 20

    wsize = jnp.dtype(w_dtype).itemsize
    wb_bytes = 2 * (C * C * wsize + C * 4)            # W + bias (worst-case 2 bufs)
    pipe_budget = max(int(vmem_cap * 0.6) - wb_bytes, 2 << 20)

    # Spatial tile sized by bytes, 128-aligned, clamped so 2(in/out) x
    # 2(double-buffer) tiles fit the per-generation VMEM budget.
    per_lane_bytes = C * itemsize
    T = min(_round_down_to_128(target_tile_bytes // per_lane_bytes),
            _round_down_to_128(pipe_budget // (4 * per_lane_bytes)))

    Bt = 1
    if T >= HW:
        # Whole image fits one block: use the exact extent (a full-extent last
        # dim needs no 128 alignment) and block over batch to reach the byte
        # target, amortizing the ~0.35 us per-grid-step overhead.
        T = HW
        per_batch_bytes = max(C * HW * itemsize, 1)
        bt_cap = int(min(target_tile_bytes // per_batch_bytes,
                         pipe_budget // (4 * per_batch_bytes)))
        bt_cap = max(1, min(B, bt_cap))
        Bt = max(d for d in range(1, bt_cap + 1) if B % d == 0)
    n_hw = pl.cdiv(HW, T)            # ragged last spatial block -> Pallas masks it
    grid = (B // Bt, n_hw)

    x3 = x_nchw.reshape(B, C, HW)    # free reshape, NCHW-native

    # VMEM limit from the actual tiles; always explicit (v5e default is 16 MiB),
    # capped at physical capacity so the same path is v7x-safe.
    tile_bytes = Bt * C * T * itemsize
    vmem_limit = int(min(vmem_cap,
                         max(4 * tile_bytes + wb_bytes + (8 << 20), 32 << 20)))

    x_block = (None, C, T) if Bt == 1 else (Bt, C, T)
    kernel = _make_glu_kernel(C, Bt, use_mxu)

    def build(single_buffer_wb):
        # W/bias have constant index maps; their second pipeline buffer is pure
        # waste, so request a single buffer when supported.
        extra = dict(pipeline_mode=pl.Buffered(1)) if single_buffer_wb else {}
        return pl.pallas_call(
            kernel,
            out_shape=jax.ShapeDtypeStruct((B, C, HW), dtype),
            grid=grid,
            in_specs=[
                pl.BlockSpec(x_block, lambda bb, t: (bb, 0, t)),
                pl.BlockSpec((C, C), lambda bb, t: (0, 0), **extra),
                pl.BlockSpec((C, 1), lambda bb, t: (0, 0), **extra),
            ],
            out_specs=pl.BlockSpec(x_block, lambda bb, t: (bb, 0, t)),
            compiler_params=pltpu.CompilerParams(
                dimension_semantics=("parallel", "parallel"),
                vmem_limit_bytes=vmem_limit,
            ),
        )

    try:
        out3 = build(single_buffer_wb=True)(x3, w_k, b_k)
    except Exception:
        # Fallback for JAX versions without BlockSpec(pipeline_mode=...);
        # correctness unaffected, just double-buffered W/b.
        out3 = build(single_buffer_wb=False)(x3, w_k, b_k)

    return out3.reshape(B, C, H, W)


def glu_reference(x_nchw, w, b):
    """Pure-JAX reference mirroring the PyTorch forward exactly."""
    x_nhwc = jnp.transpose(x_nchw, (0, 2, 3, 1))
    lin = x_nhwc @ jnp.asarray(w).T + jnp.asarray(b)
    lin = jnp.transpose(lin, (0, 3, 1, 2))
    return lin * jax.nn.sigmoid(x_nchw)


def _rand_case(seed, B, C, H, W, dtype=jnp.float32):
    kx, kw, kb = jax.random.split(jax.random.PRNGKey(seed), 3)
    x = jax.random.normal(kx, (B, C, H, W), dtype=dtype)
    bound = 1.0 / float(C) ** 0.5
    w = jax.random.uniform(kw, (C, C), minval=-bound, maxval=bound, dtype=jnp.float32)
    b = jax.random.uniform(kb, (C,), minval=-bound, maxval=bound, dtype=jnp.float32)
    return x, w, b


if __name__ == "__main__":
    # 1) Small-C VPU path, batch-blocked (whole 16x16 image per block).
    x, w, b = _rand_case(0, 2, 4, 16, 16)
    out = jax.block_until_ready(glu_pallas(x, w, b))
    assert out.shape == x.shape
    assert jnp.allclose(out, glu_reference(x, w, b), atol=1e-5, rtol=1e-5)

    # 2) MXU path (C=32, f32), batch-blocked small image.
    x2, w2, b2 = _rand_case(1, 2, 32, 8, 8)
    out2 = jax.block_until_ready(glu_pallas(x2, w2, b2))
    assert jnp.allclose(out2, glu_reference(x2, w2, b2), atol=1e-3, rtol=1e-3)

    # 3) Unaligned spatial extent split over several 128-lane tiles: exercises
    #    the Pallas-masked ragged last block (no pad / no output slice).
    x3, w3, b3 = _rand_case(2, 2, 8, 20, 25)        # HW = 500
    out3 = jax.block_until_ready(glu_pallas(x3, w3, b3, target_tile_bytes=4096))
    assert jnp.allclose(out3, glu_reference(x3, w3, b3), atol=1e-5, rtol=1e-5)

    # 4) MXU path without batch blocking (B=1).
    x4, w4, b4 = _rand_case(3, 1, 32, 8, 8)
    out4 = jax.block_until_ready(glu_pallas(x4, w4, b4))
    assert jnp.allclose(out4, glu_reference(x4, w4, b4), atol=1e-3, rtol=1e-3)

    print("KERNEL_OK")
</pallas_src>

<mosaic_0001>
module attributes {stable_mosaic.version = 11 : i64} {
  func.func @kernel(%arg0: i32, %arg1: i32, %arg2: memref<2x4x256xf32, #tpu.memory_space<vmem>>, %arg3: memref<4x4xf32, #tpu.memory_space<vmem>>, %arg4: memref<4x1xf32, #tpu.memory_space<vmem>>, %arg5: memref<2x4x256xf32, #tpu.memory_space<vmem>>) attributes {dimension_semantics = [#tpu.dimension_semantics<parallel>, #tpu.dimension_semantics<parallel>], iteration_bounds = array<i64: 1, 1>, scalar_prefetch = 0 : i64, scratch_operands = 0 : i64, tpu.core_type = #tpu.core_type<tc>, window_params = [{transform_indices = @transform_0, window_bounds = array<i64: 2, 4, 256>}, {pipeline_mode = #tpu.pipeline_mode<synchronous>, transform_indices = @transform_1, window_bounds = array<i64: 4, 4>}, {pipeline_mode = #tpu.pipeline_mode<synchronous>, transform_indices = @transform_2, window_bounds = array<i64: 4, 1>}, {transform_indices = @transform_3, window_bounds = array<i64: 2, 4, 256>}]} {
    %c0 = arith.constant 0 : index
    %c0_0 = arith.constant 0 : index
    %c0_1 = arith.constant 0 : index
    %0 = vector.load %arg2[%c0, %c0_0, %c0_1] : memref<2x4x256xf32, #tpu.memory_space<vmem>>, vector<2x4x256xf32>
    %c0_2 = arith.constant 0 : index
    %c0_3 = arith.constant 0 : index
    %1 = vector.load %arg3[%c0_2, %c0_3] : memref<4x4xf32, #tpu.memory_space<vmem>>, vector<4x4xf32>
    %c0_4 = arith.constant 0 : index
    %c0_5 = arith.constant 0 : index
    %2 = vector.load %arg4[%c0_4, %c0_5] : memref<4x1xf32, #tpu.memory_space<vmem>>, vector<4x1xf32>
    %3 = vector.shape_cast %2 : vector<4x1xf32> to vector<1x4x1xf32>
    %4 = vector.shape_cast %3 : vector<1x4x1xf32> to vector<1x4x1xf32>
    %5 = vector.broadcast %4 : vector<1x4x1xf32> to vector<2x4x256xf32>
    %6 = vector.extract_strided_slice %1 {offsets = [0, 0], sizes = [4, 1], strides = [1, 1]} : vector<4x4xf32> to vector<4x1xf32>
    %7 = vector.shape_cast %6 : vector<4x1xf32> to vector<1x4x1xf32>
    %8 = vector.extract_strided_slice %0 {offsets = [0, 0, 0], sizes = [2, 1, 256], strides = [1, 1, 1]} : vector<2x4x256xf32> to vector<2x1x256xf32>
    %9 = vector.broadcast %7 : vector<1x4x1xf32> to vector<2x4x256xf32>
    %10 = vector.broadcast %8 : vector<2x1x256xf32> to vector<2x4x256xf32>
    %11 = arith.mulf %9, %10 : vector<2x4x256xf32>
    %12 = arith.addf %5, %11 : vector<2x4x256xf32>
    %13 = vector.extract_strided_slice %1 {offsets = [0, 1], sizes = [4, 1], strides = [1, 1]} : vector<4x4xf32> to vector<4x1xf32>
    %14 = vector.shape_cast %13 : vector<4x1xf32> to vector<1x4x1xf32>
    %15 = vector.extract_strided_slice %0 {offsets = [0, 1, 0], sizes = [2, 1, 256], strides = [1, 1, 1]} : vector<2x4x256xf32> to vector<2x1x256xf32>
    %16 = vector.broadcast %14 : vector<1x4x1xf32> to vector<2x4x256xf32>
    %17 = vector.broadcast %15 : vector<2x1x256xf32> to vector<2x4x256xf32>
    %18 = arith.mulf %16, %17 : vector<2x4x256xf32>
    %19 = arith.addf %12, %18 : vector<2x4x256xf32>
    %20 = vector.extract_strided_slice %1 {offsets = [0, 2], sizes = [4, 1], strides = [1, 1]} : vector<4x4xf32> to vector<4x1xf32>
    %21 = vector.shape_cast %20 : vector<4x1xf32> to vector<1x4x1xf32>
    %22 = vector.extract_strided_slice %0 {offsets = [0, 2, 0], sizes = [2, 1, 256], strides = [1, 1, 1]} : vector<2x4x256xf32> to vector<2x1x256xf32>
    %23 = vector.broadcast %21 : vector<1x4x1xf32> to vector<2x4x256xf32>
    %24 = vector.broadcast %22 : vector<2x1x256xf32> to vector<2x4x256xf32>
    %25 = arith.mulf %23, %24 : vector<2x4x256xf32>
    %26 = arith.addf %19, %25 : vector<2x4x256xf32>
    %27 = vector.extract_strided_slice %1 {offsets = [0, 3], sizes = [4, 1], strides = [1, 1]} : vector<4x4xf32> to vector<4x1xf32>
    %28 = vector.shape_cast %27 : vector<4x1xf32> to vector<1x4x1xf32>
    %29 = vector.extract_strided_slice %0 {offsets = [0, 3, 0], sizes = [2, 1, 256], strides = [1, 1, 1]} : vector<2x4x256xf32> to vector<2x1x256xf32>
    %30 = vector.broadcast %28 : vector<1x4x1xf32> to vector<2x4x256xf32>
    %31 = vector.broadcast %29 : vector<2x1x256xf32> to vector<2x4x256xf32>
    %32 = arith.mulf %30, %31 : vector<2x4x256xf32>
    %33 = arith.addf %26, %32 : vector<2x4x256xf32>
    %34 = arith.negf %0 : vector<2x4x256xf32>
    %35 = math.exp %34 : vector<2x4x256xf32>
    %cst = arith.constant 1.000000e+00 : f32
    %36 = vector.broadcast %cst : f32 to vector<2x4x256xf32>
    %37 = arith.addf %36, %35 : vector<2x4x256xf32>
    %38 = arith.divf %36, %37 : vector<2x4x256xf32>
    %39 = arith.mulf %33, %38 : vector<2x4x256xf32>
    %c0_6 = arith.constant 0 : index
    %c0_7 = arith.constant 0 : index
    %c0_8 = arith.constant 0 : index
    %40 = vector.load %arg5[%c0_6, %c0_7, %c0_8] : memref<2x4x256xf32, #tpu.memory_space<vmem>>, vector<2x4x256xf32>
    tpu.vector_store %arg5[%c0_6, %c0_7, %c0_8], %39 {strides = array<i32>} : memref<2x4x256xf32, #tpu.memory_space<vmem>>, vector<2x4x256xf32>,
    return
  }
  func.func @transform_0(%arg0: i32, %arg1: i32) -> (i32, i32, i32) {
    %c0_i32 = arith.constant 0 : i32
    %c0_i32_0 = arith.constant 0 : i32
    return %arg0, %c0_i32, %arg1 : i32, i32, i32
  }
  func.func @transform_1(%arg0: i32, %arg1: i32) -> (i32, i32) {
    %c0_i32 = arith.constant 0 : i32
    %c0_i32_0 = arith.constant 0 : i32
    %c0_i32_1 = arith.constant 0 : i32
    return %c0_i32, %c0_i32_0 : i32, i32
  }
  func.func @transform_2(%arg0: i32, %arg1: i32) -> (i32, i32) {
    %c0_i32 = arith.constant 0 : i32
    %c0_i32_0 = arith.constant 0 : i32
    %c0_i32_1 = arith.constant 0 : i32
    return %c0_i32, %c0_i32_0 : i32, i32
  }
  func.func @transform_3(%arg0: i32, %arg1: i32) -> (i32, i32, i32) {
    %c0_i32 = arith.constant 0 : i32
    %c0_i32_0 = arith.constant 0 : i32
    return %arg0, %c0_i32, %arg1 : i32, i32, i32
  }
}

module attributes {stable_mosaic.version = 11 : i64} {
  func.func @kernel(%arg0: i32, %arg1: i32, %arg2: memref<2x4x256xf32, #tpu.memory_space<vmem>>, %arg3: memref<4x4xf32, #tpu.memory_space<vmem>>, %arg4: memref<4x1xf32, #tpu.memory_space<vmem>>, %arg5: memref<2x4x256xf32, #tpu.memory_space<vmem>>) attributes {dimension_semantics = [#tpu.dimension_semantics<parallel>, #tpu.dimension_semantics<parallel>], iteration_bounds = array<i64: 1, 1>, scalar_prefetch = 0 : i64, scratch_operands = 0 : i64, tpu.core_type = #tpu.core_type<tc>, window_params = [{transform_indices = @transform_0, window_bounds = array<i64: 2, 4, 256>}, {pipeline_mode = #tpu.pipeline_mode<synchronous>, transform_indices = @transform_1, window_bounds = array<i64: 4, 4>}, {pipeline_mode = #tpu.pipeline_mode<synchronous>, transform_indices = @transform_2, window_bounds = array<i64: 4, 1>}, {transform_indices = @transform_3, window_bounds = array<i64: 2, 4, 256>}]} {
    %c0 = arith.constant 0 : index
    %c0_0 = arith.constant 0 : index
    %c0_1 = arith.constant 0 : index
    %0 = vector.load %arg2[%c0, %c0_0, %c0_1] : memref<2x4x256xf32, #tpu.memory_space<vmem>>, vector<2x4x256xf32>
    %c0_2 = arith.constant 0 : index
    %c0_3 = arith.constant 0 : index
    %1 = vector.load %arg3[%c0_2, %c0_3] : memref<4x4xf32, #tpu.memory_space<vmem>>, vector<4x4xf32>
    %c0_4 = arith.constant 0 : index
    %c0_5 = arith.constant 0 : index
    %2 = vector.load %arg4[%c0_4, %c0_5] : memref<4x1xf32, #tpu.memory_space<vmem>>, vector<4x1xf32>
    %3 = vector.shape_cast %2 : vector<4x1xf32> to vector<1x4x1xf32>
    %4 = vector.shape_cast %3 : vector<1x4x1xf32> to vector<1x4x1xf32>
    %5 = vector.broadcast %4 : vector<1x4x1xf32> to vector<2x4x256xf32>
    %6 = vector.extract_strided_slice %1 {offsets = [0, 0], sizes = [4, 1], strides = [1, 1]} : vector<4x4xf32> to vector<4x1xf32>
    %7 = vector.shape_cast %6 : vector<4x1xf32> to vector<1x4x1xf32>
    %8 = vector.extract_strided_slice %0 {offsets = [0, 0, 0], sizes = [2, 1, 256], strides = [1, 1, 1]} : vector<2x4x256xf32> to vector<2x1x256xf32>
    %9 = vector.broadcast %7 : vector<1x4x1xf32> to vector<2x4x256xf32>
    %10 = vector.broadcast %8 : vector<2x1x256xf32> to vector<2x4x256xf32>
    %11 = arith.mulf %9, %10 : vector<2x4x256xf32>
    %12 = arith.addf %5, %11 : vector<2x4x256xf32>
    %13 = vector.extract_strided_slice %1 {offsets = [0, 1], sizes = [4, 1], strides = [1, 1]} : vector<4x4xf32> to vector<4x1xf32>
    %14 = vector.shape_cast %13 : vector<4x1xf32> to vector<1x4x1xf32>
    %15 = vector.extract_strided_slice %0 {offsets = [0, 1, 0], sizes = [2, 1, 256], strides = [1, 1, 1]} : vector<2x4x256xf32> to vector<2x1x256xf32>
    %16 = vector.broadcast %14 : vector<1x4x1xf32> to vector<2x4x256xf32>
    %17 = vector.broadcast %15 : vector<2x1x256xf32> to vector<2x4x256xf32>
    %18 = arith.mulf %16, %17 : vector<2x4x256xf32>
    %19 = arith.addf %12, %18 : vector<2x4x256xf32>
    %20 = vector.extract_strided_slice %1 {offsets = [0, 2], sizes = [4, 1], strides = [1, 1]} : vector<4x4xf32> to vector<4x1xf32>
    %21 = vector.shape_cast %20 : vector<4x1xf32> to vector<1x4x1xf32>
    %22 = vector.extract_strided_slice %0 {offsets = [0, 2, 0], sizes = [2, 1, 256], strides = [1, 1, 1]} : vector<2x4x256xf32> to vector<2x1x256xf32>
    %23 = vector.broadcast %21 : vector<1x4x1xf32> to vector<2x4x256xf32>
    %24 = vector.broadcast %22 : vector<2x1x256xf32> to vector<2x4x256xf32>
    %25 = arith.mulf %23, %24 : vector<2x4x256xf32>
    %26 = arith.addf %19, %25 : vector<2x4x256xf32>
    %27 = vector.extract_strided_slice %1 {offsets = [0, 3], sizes = [4, 1], strides = [1, 1]} : vector<4x4xf32> to vector<4x1xf32>
    %28 = vector.shape_cast %27 : vector<4x1xf32> to vector<1x4x1xf32>
    %29 = vector.extract_strided_slice %0 {offsets = [0, 3, 0], sizes = [2, 1, 256], strides = [1, 1, 1]} : vector<2x4x256xf32> to vector<2x1x256xf32>
    %30 = vector.broadcast %28 : vector<1x4x1xf32> to vector<2x4x256xf32>
    %31 = vector.broadcast %29 : vector<2x1x256xf32> to vector<2x4x256xf32>
    %32 = arith.mulf %30, %31 : vector<2x4x256xf32>
    %33 = arith.addf %26, %32 : vector<2x4x256xf32>
    %34 = arith.negf %0 : vector<2x4x256xf32>
    %35 = math.exp %34 : vector<2x4x256xf32>
    %cst = arith.constant 1.000000e+00 : f32
    %36 = vector.broadcast %cst : f32 to vector<2x4x256xf32>
    %37 = arith.addf %36, %35 : vector<2x4x256xf32>
    %38 = arith.divf %36, %37 : vector<2x4x256xf32>
    %39 = arith.mulf %33, %38 : vector<2x4x256xf32>
    %c0_6 = arith.constant 0 : index
    %c0_7 = arith.constant 0 : index
    %c0_8 = arith.constant 0 : index
    %40 = vector.load %arg5[%c0_6, %c0_7, %c0_8] : memref<2x4x256xf32, #tpu.memory_space<vmem>>, vector<2x4x256xf32>
    tpu.vector_store %arg5[%c0_6, %c0_7, %c0_8], %39 {strides = array<i32>} : memref<2x4x256xf32, #tpu.memory_space<vmem>>, vector<2x4x256xf32>,
    return
  }
  func.func @transform_0(%arg0: i32, %arg1: i32) -> (i32, i32, i32) {
    %c0_i32 = arith.constant 0 : i32
    %c0_i32_0 = arith.constant 0 : i32
    return %arg0, %c0_i32, %arg1 : i32, i32, i32
  }
  func.func @transform_1(%arg0: i32, %arg1: i32) -> (i32, i32) {
    %c0_i32 = arith.constant 0 : i32
    %c0_i32_0 = arith.constant 0 : i32
    %c0_i32_1 = arith.constant 0 : i32
    return %c0_i32, %c0_i32_0 : i32, i32
  }
  func.func @transform_2(%arg0: i32, %arg1: i32) -> (i32, i32) {
    %c0_i32 = arith.constant 0 : i32
    %c0_i32_0 = arith.constant 0 : i32
    %c0_i32_1 = arith.constant 0 : i32
    return %c0_i32, %c0_i32_0 : i32, i32
  }
  func.func @transform_3(%arg0: i32, %arg1: i32) -> (i32, i32, i32) {
    %c0_i32 = arith.constant 0 : i32
    %c0_i32_0 = arith.constant 0 : i32
    return %arg0, %c0_i32, %arg1 : i32, i32, i32
  }
}

</mosaic_0001>

<llo_original>
// kernel: tpu_custom_call.1
$region0: #{tpu_custom_call.1}
  #allocation0 [shape = 'u32[]', space=smem, size = 0x4, offset = 0x4, fixed_abs, tag = 'smem constant byte address 0x4 - core index']
  #allocation1 [shape = 'u32[72,128]{1,0:T(1,128)}', space=vmem, size = 0x9000, scoped, tag = 'internal scratch']
  %s0 = inlined_call_operand.hbm [shape: f32[2,4,256], index: 0, kind: input, shape index: {}]
  %s1 = inlined_call_operand.vmem [shape: f32[4,4], index: 1, kind: input, shape index: {}]
  %s2 = inlined_call_operand.vmem [shape: f32[4,1], index: 2, kind: input, shape index: {}]
  %s3 = inlined_call_operand.hbm [shape: f32[2,4,256], index: 3, kind: output, shape index: {}]
  %s4 = sld [smem:[#allocation0]]
  $region26: #{tpu_custom_call.1} parent=0
    _
  %s6 = ssub.s32 1, %s4
  %s7 = scalar_select 0, %s6, %s4
  $region1: #{tpu_custom_call.1} parent=0
    #allocation2 [shape = 'u8[8192]{0}', space=vmem, size = 0x2000, scoped, tag = 'input window, operand 0, single buffered']
    #allocation3 [shape = 's32[1]{0}', space=sflag, size = 0x4, scoped, tag = 'scoped memory for tpu_custom_call.1']
    #allocation4 [shape = 's32[1]{0}', space=sflag, size = 0x4, scoped, tag = 'scoped memory for tpu_custom_call.1']
    #allocation5 [shape = 'u8[8192]{0}', space=vmem, size = 0x2000, scoped, tag = 'output window, operand 0, single buffered']
    %8 = vsyncpa [#allocation3], 0
    %9 = vsyncpa [#allocation4], 0
    // Predicated region
    $region2: #{tpu_custom_call.1} parent=1 // pred_check
      _
    $region3: #{tpu_custom_call.1} parent=1 // pred_check_branch
      %11 = sbr.rel (0) target = $region5
    $region4: #{tpu_custom_call.1} parent=1 // pred_region
      %13 = vsyncadd [#allocation3], 0
      %s14 = sshll.u32 %s0, 4
      %s15 = int_to_ptr.hbm [resolvable:$true] %s14
      %s16 = sshll.u32 [#allocation2], 4
      %s17 = int_to_ptr.vmem [resolvable:$true] %s16
      %22 = dma.hbm_to_vmem [thread:$0]  %s15, 256, %s17, [#allocation3], 128, 128, 8
    $region5: #{tpu_custom_call.1} parent=1 // pred_fallthru
      _
    // Predicated region
    $region6: #{tpu_custom_call.1} parent=1 // pred_check
      _
    $region7: #{tpu_custom_call.1} parent=1 // pred_check_branch
      %24 = sbr.rel (0) target = $region9
    $region8: #{tpu_custom_call.1} parent=1 // pred_region
      _
    $region9: #{tpu_custom_call.1} parent=1 // pred_fallthru
      _
    // Predicated region
    $region10: #{tpu_custom_call.1} parent=1 // pred_check
      _
    $region11: #{tpu_custom_call.1} parent=1 // pred_check_branch
      %26 = sbr.rel (0) target = $region13
    $region12: #{tpu_custom_call.1} parent=1 // pred_region
      _
    $region13: #{tpu_custom_call.1} parent=1 // pred_fallthru
      _
    // Predicated region
    $region14: #{tpu_custom_call.1} parent=1 // pred_check
      _
    $region15: #{tpu_custom_call.1} parent=1 // pred_check_branch
      %28 = sbr.rel (0) target = $region17
    $region16: #{tpu_custom_call.1} parent=1 // pred_region
      %30 = dma.done [#allocation3], 256
    $region17: #{tpu_custom_call.1} parent=1 // pred_fallthru
      _
    %v31 = vld [vmem:[#allocation2] sm:$0xff]
    %v32 = vld [vmem:[#allocation2 + $0x8] sm:$0xff]
    %v33 = vld [vmem:[%s1] sm:$0xf]
    %v34 = vld [vmem:[%s2] sm:$0xf]
    %36 = vset.pattern.permute.xlu0 0
    %37 = vperm.xlu0 %36, %v34
    %v38 = vpop.permute.xlu0 %37
    %41 = vset.pattern.permute.xlu0 0
    %42 = vperm.xlu0 %41, %v33
    %v43 = vpop.permute.xlu0 %42
    %v47 = vperm.slane %v31, 0
    %v48 = vperm.slane %v31, 4
    %v49 = vperm.slane %v32, 0
    %v50 = vperm.slane %v32, 4
    %v55 = vperm.slane %v47, 0
    %v56 = vperm.slane %v48, 0
    %v57 = vperm.slane %v49, 0
    %v58 = vperm.slane %v50, 0
    %v59 = vmul.f32 %v43, %v55
    %v60 = vmul.f32 %v43, %v56
    %v61 = vmul.f32 %v43, %v57
    %v62 = vmul.f32 %v43, %v58
    %v63 = vadd.f32 %v38, %v59
    %v64 = vadd.f32 %v38, %v60
    %v65 = vadd.f32 %v38, %v61
    %v66 = vadd.f32 %v38, %v62
    %67 = vset.pattern.permute.xlu0 1
    %68 = vperm.xlu0 %67, %v33
    %v69 = vpop.permute.xlu0 %68
    %v71 = vperm.slane %v31, 1
    %v72 = vperm.slane %v31, 5
    %v73 = vperm.slane %v32, 1
    %v74 = vperm.slane %v32, 5
    %v79 = vperm.slane %v71, 1
    %v80 = vperm.slane %v72, 1
    %v81 = vperm.slane %v73, 1
    %v82 = vperm.slane %v74, 1
    %v83 = vmul.f32 %v69, %v79
    %v84 = vmul.f32 %v69, %v80
    %v85 = vmul.f32 %v69, %v81
    %v86 = vmul.f32 %v69, %v82
    %v87 = vadd.f32 %v63, %v83
    %v88 = vadd.f32 %v64, %v84
    %v89 = vadd.f32 %v65, %v85
    %v90 = vadd.f32 %v66, %v86
    %91 = vset.pattern.permute.xlu0 2
    %92 = vperm.xlu0 %91, %v33
    %v93 = vpop.permute.xlu0 %92
    %v95 = vperm.slane %v31, 2
    %v96 = vperm.slane %v31, 6
    %v97 = vperm.slane %v32, 2
    %v98 = vperm.slane %v32, 6
    %v103 = vperm.slane %v95, 2
    %v104 = vperm.slane %v96, 2
    %v105 = vperm.slane %v97, 2
    %v106 = vperm.slane %v98, 2
    %v107 = vmul.f32 %v93, %v103
    %v108 = vmul.f32 %v93, %v104
    %v109 = vmul.f32 %v93, %v105
    %v110 = vmul.f32 %v93, %v106
    %v111 = vadd.f32 %v87, %v107
    %v112 = vadd.f32 %v88, %v108
    %v113 = vadd.f32 %v89, %v109
    %v114 = vadd.f32 %v90, %v110
    %115 = vset.pattern.permute.xlu0 3
    %116 = vperm.xlu0 %115, %v33
    %v117 = vpop.permute.xlu0 %116
    %v119 = vperm.slane %v31, 3
    %v120 = vperm.slane %v31, 7
    %v121 = vperm.slane %v32, 3
    %v122 = vperm.slane %v32, 7
    %v127 = vperm.slane %v119, 3
    %v128 = vperm.slane %v120, 3
    %v129 = vperm.slane %v121, 3
    %v130 = vperm.slane %v122, 3
    %v131 = vmul.f32 %v117, %v127
    %v132 = vmul.f32 %v117, %v128
    %v133 = vmul.f32 %v117, %v129
    %v134 = vmul.f32 %v117, %v130
    %v135 = vadd.f32 %v111, %v131
    %v136 = vadd.f32 %v112, %v132
    %v137 = vadd.f32 %v113, %v133
    %v138 = vadd.f32 %v114, %v134
    %v139 = vxor.u32 %v31, 2147483648
    %v140 = vxor.u32 %v32, 2147483648
    %v141 = vmul.f32 %v139, 1.442695
    %v142 = vpow.pop %v141
    %v143 = vmul.f32 %v140, 1.442695
    %v144 = vpow.pop %v143
    %v145 = vadd.f32 %v142, 1.0
    %v146 = vadd.f32 %v144, 1.0
    %v147 = vrcp.pop %v145
    %v148 = vmul.f32 %v145, %v147
    %v149 = vsub.f32 1.0, %v148
    %v150 = vmul.f32 %v147, %v149
    %v151 = vadd.f32 %v147, %v150
    %vm152 = vweird.f32 %v145
    %vm153 = vweird.f32 %v147
    %vm154 = vmor %vm152, %vm153
    %v155 = vsel %vm154, %v147, %v151
    %v156 = vand.u32 2147483647, %v145
    %vm157 = vcmp.eq.f32.partialorder %v156, 8.507059e+37
    %v158 = vand.u32 %v145, 2147483648
    %v159 = vor.u32 1.1754944e-38, %v158
    %v160 = vsel %vm157, %v159, %v155
    %v161 = vmul.f32 1.0, %v160
    %v162 = vrcp.pop %v146
    %v163 = vmul.f32 %v146, %v162
    %v164 = vsub.f32 1.0, %v163
    %v165 = vmul.f32 %v162, %v164
    %v166 = vadd.f32 %v162, %v165
    %vm167 = vweird.f32 %v146
    %vm168 = vweird.f32 %v162
    %vm169 = vmor %vm167, %vm168
    %v170 = vsel %vm169, %v162, %v166
    %v171 = vand.u32 2147483647, %v146
    %vm172 = vcmp.eq.f32.partialorder %v171, 8.507059e+37
    %v173 = vand.u32 %v146, 2147483648
    %v174 = vor.u32 1.1754944e-38, %v173
    %v175 = vsel %vm172, %v174, %v170
    %v176 = vmul.f32 1.0, %v175
    %179 = vst [vmem:[#allocation1] ss:$2 sm:$0xff] %v161
    %v180 = vld.sshfl [vmem:[#allocation1] sm:$0xff pattern:$0x75316420]
    %v181 = vld.sshfl [vmem:[#allocation1 + $0x8] sm:$0xff pattern:$0x75316420]
    %s182 = scalar_lea.vmem [#allocation1], 16
    %183 = vst [vmem:[%s182] ss:$2 sm:$0xff] %v176
    %v184 = vld.sshfl [vmem:[#allocation1 + $0x10] sm:$0xff pattern:$0x75316420]
    %v185 = vld.sshfl [vmem:[#allocation1 + $0x18] sm:$0xff pattern:$0x75316420]
    %v190 = vmul.f32 %v135, %v180
    %v191 = vmul.f32 %v136, %v181
    %v192 = vmul.f32 %v137, %v184
    %v193 = vmul.f32 %v138, %v185
    %v198 = vrot.slane %v191, 4
    %v199 = vrot.slane %v193, 4
    %vm200 = vcmask 1043456
    %v201 = vsel %vm200, %v190, %v198
    %v202 = vsel %vm200, %v192, %v199
    %205 = vst [vmem:[#allocation5] sm:$0xff] %v201
    %206 = vst [vmem:[#allocation5 + $0x8] sm:$0xff] %v202
    // Predicated region
    $region18: #{tpu_custom_call.1} parent=1 // pred_check
      _
    $region19: #{tpu_custom_call.1} parent=1 // pred_check_branch
      %208 = sbr.rel (0) target = $region21
    $region20: #{tpu_custom_call.1} parent=1 // pred_region
      %210 = vsyncadd [#allocation4], 0
      %s211 = sshll.u32 [#allocation5], 4
      %s212 = int_to_ptr.vmem [resolvable:$true] %s211
      %s213 = sshll.u32 %s3, 4
      %s214 = int_to_ptr.hbm [resolvable:$true] %s213
      %219 = dma.vmem_to_hbm [thread:$0]  %s212, 256, %s214, [#allocation4], 128, 128, 8
    $region21: #{tpu_custom_call.1} parent=1 // pred_fallthru
      _
    // Predicated region
    $region22: #{tpu_custom_call.1} parent=1 // pred_check
      _
    $region23: #{tpu_custom_call.1} parent=1 // pred_check_branch
      %221 = sbr.rel (0) target = $region25
    $region24: #{tpu_custom_call.1} parent=1 // pred_region
      %223 = dma.done [#allocation4], 256
    $region25: #{tpu_custom_call.1} parent=1 // pred_fallthru
      _
    %224 = vsyncpa [#allocation3], 1
    %225 = vsyncpa [#allocation4], 1

// kernel: tpu_custom_call.1
$region0: #{tpu_custom_call.1}
  #allocation0 [shape = 'u32[]', space=smem, size = 0x4, offset = 0x4, fixed_abs, tag = 'smem constant byte address 0x4 - core index']
  #allocation1 [shape = 'u32[72,128]{1,0:T(1,128)}', space=vmem, size = 0x9000, scoped, tag = 'internal scratch']
  %s0 = inlined_call_operand.hbm [shape: f32[2,4,256], index: 0, kind: input, shape index: {}]
  %s1 = inlined_call_operand.vmem [shape: f32[4,4], index: 1, kind: input, shape index: {}]
  %s2 = inlined_call_operand.vmem [shape: f32[4,1], index: 2, kind: input, shape index: {}]
  %s3 = inlined_call_operand.hbm [shape: f32[2,4,256], index: 3, kind: output, shape index: {}]
  %s4 = sld [smem:[#allocation0]]
  $region26: #{tpu_custom_call.1} parent=0
    _
  %s6 = ssub.s32 1, %s4
  %s7 = scalar_select 0, %s6, %s4
  $region1: #{tpu_custom_call.1} parent=0
    #allocation2 [shape = 'u8[8192]{0}', space=vmem, size = 0x2000, scoped, tag = 'input window, operand 0, single buffered']
    #allocation3 [shape = 's32[1]{0}', space=sflag, size = 0x4, scoped, tag = 'scoped memory for tpu_custom_call.1']
    #allocation4 [shape = 's32[1]{0}', space=sflag, size = 0x4, scoped, tag = 'scoped memory for tpu_custom_call.1']
    #allocation5 [shape = 'u8[8192]{0}', space=vmem, size = 0x2000, scoped, tag = 'output window, operand 0, single buffered']
    %8 = vsyncpa [#allocation3], 0
    %9 = vsyncpa [#allocation4], 0
    // Predicated region
    $region2: #{tpu_custom_call.1} parent=1 // pred_check
      _
    $region3: #{tpu_custom_call.1} parent=1 // pred_check_branch
      %11 = sbr.rel (0) target = $region5
    $region4: #{tpu_custom_call.1} parent=1 // pred_region
      %13 = vsyncadd [#allocation3], 0
      %s14 = sshll.u32 %s0, 4
      %s15 = int_to_ptr.hbm [resolvable:$true] %s14
      %s16 = sshll.u32 [#allocation2], 4
      %s17 = int_to_ptr.vmem [resolvable:$true] %s16
      %22 = dma.hbm_to_vmem [thread:$0]  %s15, 256, %s17, [#allocation3], 128, 128, 8
    $region5: #{tpu_custom_call.1} parent=1 // pred_fallthru
      _
    // Predicated region
    $region6: #{tpu_custom_call.1} parent=1 // pred_check
      _
    $region7: #{tpu_custom_call.1} parent=1 // pred_check_branch
      %24 = sbr.rel (0) target = $region9
    $region8: #{tpu_custom_call.1} parent=1 // pred_region
      _
    $region9: #{tpu_custom_call.1} parent=1 // pred_fallthru
      _
    // Predicated region
    $region10: #{tpu_custom_call.1} parent=1 // pred_check
      _
    $region11: #{tpu_custom_call.1} parent=1 // pred_check_branch
      %26 = sbr.rel (0) target = $region13
    $region12: #{tpu_custom_call.1} parent=1 // pred_region
      _
    $region13: #{tpu_custom_call.1} parent=1 // pred_fallthru
      _
    // Predicated region
    $region14: #{tpu_custom_call.1} parent=1 // pred_check
      _
    $region15: #{tpu_custom_call.1} parent=1 // pred_check_branch
      %28 = sbr.rel (0) target = $region17
    $region16: #{tpu_custom_call.1} parent=1 // pred_region
      %30 = dma.done [#allocation3], 256
    $region17: #{tpu_custom_call.1} parent=1 // pred_fallthru
      _
    %v31 = vld [vmem:[#allocation2] sm:$0xff]
    %v32 = vld [vmem:[#allocation2 + $0x8] sm:$0xff]
    %v33 = vld [vmem:[%s1] sm:$0xf]
    %v34 = vld [vmem:[%s2] sm:$0xf]
    %36 = vset.pattern.permute.xlu0 0
    %37 = vperm.xlu0 %36, %v34
    %v38 = vpop.permute.xlu0 %37
    %41 = vset.pattern.permute.xlu0 0
    %42 = vperm.xlu0 %41, %v33
    %v43 = vpop.permute.xlu0 %42
    %v47 = vperm.slane %v31, 0
    %v48 = vperm.slane %v31, 4
    %v49 = vperm.slane %v32, 0
    %v50 = vperm.slane %v32, 4
    %v55 = vperm.slane %v47, 0
    %v56 = vperm.slane %v48, 0
    %v57 = vperm.slane %v49, 0
    %v58 = vperm.slane %v50, 0
    %v59 = vmul.f32 %v43, %v55
    %v60 = vmul.f32 %v43, %v56
    %v61 = vmul.f32 %v43, %v57
    %v62 = vmul.f32 %v43, %v58
    %v63 = vadd.f32 %v38, %v59
    %v64 = vadd.f32 %v38, %v60
    %v65 = vadd.f32 %v38, %v61
    %v66 = vadd.f32 %v38, %v62
    %67 = vset.pattern.permute.xlu0 1
    %68 = vperm.xlu0 %67, %v33
    %v69 = vpop.permute.xlu0 %68
    %v71 = vperm.slane %v31, 1
    %v72 = vperm.slane %v31, 5
    %v73 = vperm.slane %v32, 1
    %v74 = vperm.slane %v32, 5
    %v79 = vperm.slane %v71, 1
    %v80 = vperm.slane %v72, 1
    %v81 = vperm.slane %v73, 1
    %v82 = vperm.slane %v74, 1
    %v83 = vmul.f32 %v69, %v79
    %v84 = vmul.f32 %v69, %v80
    %v85 = vmul.f32 %v69, %v81
    %v86 = vmul.f32 %v69, %v82
    %v87 = vadd.f32 %v63, %v83
    %v88 = vadd.f32 %v64, %v84
    %v89 = vadd.f32 %v65, %v85
    %v90 = vadd.f32 %v66, %v86
    %91 = vset.pattern.permute.xlu0 2
    %92 = vperm.xlu0 %91, %v33
    %v93 = vpop.permute.xlu0 %92
    %v95 = vperm.slane %v31, 2
    %v96 = vperm.slane %v31, 6
    %v97 = vperm.slane %v32, 2
    %v98 = vperm.slane %v32, 6
    %v103 = vperm.slane %v95, 2
    %v104 = vperm.slane %v96, 2
    %v105 = vperm.slane %v97, 2
    %v106 = vperm.slane %v98, 2
    %v107 = vmul.f32 %v93, %v103
    %v108 = vmul.f32 %v93, %v104
    %v109 = vmul.f32 %v93, %v105
    %v110 = vmul.f32 %v93, %v106
    %v111 = vadd.f32 %v87, %v107
    %v112 = vadd.f32 %v88, %v108
    %v113 = vadd.f32 %v89, %v109
    %v114 = vadd.f32 %v90, %v110
    %115 = vset.pattern.permute.xlu0 3
    %116 = vperm.xlu0 %115, %v33
    %v117 = vpop.permute.xlu0 %116
    %v119 = vperm.slane %v31, 3
    %v120 = vperm.slane %v31, 7
    %v121 = vperm.slane %v32, 3
    %v122 = vperm.slane %v32, 7
    %v127 = vperm.slane %v119, 3
    %v128 = vperm.slane %v120, 3
    %v129 = vperm.slane %v121, 3
    %v130 = vperm.slane %v122, 3
    %v131 = vmul.f32 %v117, %v127
    %v132 = vmul.f32 %v117, %v128
    %v133 = vmul.f32 %v117, %v129
    %v134 = vmul.f32 %v117, %v130
    %v135 = vadd.f32 %v111, %v131
    %v136 = vadd.f32 %v112, %v132
    %v137 = vadd.f32 %v113, %v133
    %v138 = vadd.f32 %v114, %v134
    %v139 = vxor.u32 %v31, 2147483648
    %v140 = vxor.u32 %v32, 2147483648
    %v141 = vmul.f32 %v139, 1.442695
    %v142 = vpow.pop %v141
    %v143 = vmul.f32 %v140, 1.442695
    %v144 = vpow.pop %v143
    %v145 = vadd.f32 %v142, 1.0
    %v146 = vadd.f32 %v144, 1.0
    %v147 = vrcp.pop %v145
    %v148 = vmul.f32 %v145, %v147
    %v149 = vsub.f32 1.0, %v148
    %v150 = vmul.f32 %v147, %v149
    %v151 = vadd.f32 %v147, %v150
    %vm152 = vweird.f32 %v145
    %vm153 = vweird.f32 %v147
    %vm154 = vmor %vm152, %vm153
    %v155 = vsel %vm154, %v147, %v151
    %v156 = vand.u32 2147483647, %v145
    %vm157 = vcmp.eq.f32.partialorder %v156, 8.507059e+37
    %v158 = vand.u32 %v145, 2147483648
    %v159 = vor.u32 1.1754944e-38, %v158
    %v160 = vsel %vm157, %v159, %v155
    %v161 = vmul.f32 1.0, %v160
    %v162 = vrcp.pop %v146
    %v163 = vmul.f32 %v146, %v162
    %v164 = vsub.f32 1.0, %v163
    %v165 = vmul.f32 %v162, %v164
    %v166 = vadd.f32 %v162, %v165
    %vm167 = vweird.f32 %v146
    %vm168 = vweird.f32 %v162
    %vm169 = vmor %vm167, %vm168
    %v170 = vsel %vm169, %v162, %v166
    %v171 = vand.u32 2147483647, %v146
    %vm172 = vcmp.eq.f32.partialorder %v171, 8.507059e+37
    %v173 = vand.u32 %v146, 2147483648
    %v174 = vor.u32 1.1754944e-38, %v173
    %v175 = vsel %vm172, %v174, %v170
    %v176 = vmul.f32 1.0, %v175
    %179 = vst [vmem:[#allocation1] ss:$2 sm:$0xff] %v161
    %v180 = vld.sshfl [vmem:[#allocation1] sm:$0xff pattern:$0x75316420]
    %v181 = vld.sshfl [vmem:[#allocation1 + $0x8] sm:$0xff pattern:$0x75316420]
    %s182 = scalar_lea.vmem [#allocation1], 16
    %183 = vst [vmem:[%s182] ss:$2 sm:$0xff] %v176
    %v184 = vld.sshfl [vmem:[#allocation1 + $0x10] sm:$0xff pattern:$0x75316420]
    %v185 = vld.sshfl [vmem:[#allocation1 + $0x18] sm:$0xff pattern:$0x75316420]
    %v190 = vmul.f32 %v135, %v180
    %v191 = vmul.f32 %v136, %v181
    %v192 = vmul.f32 %v137, %v184
    %v193 = vmul.f32 %v138, %v185
    %v198 = vrot.slane %v191, 4
    %v199 = vrot.slane %v193, 4
    %vm200 = vcmask 1043456
    %v201 = vsel %vm200, %v190, %v198
    %v202 = vsel %vm200, %v192, %v199
    %205 = vst [vmem:[#allocation5] sm:$0xff] %v201
    %206 = vst [vmem:[#allocation5 + $0x8] sm:$0xff] %v202
    // Predicated region
    $region18: #{tpu_custom_call.1} parent=1 // pred_check
      _
    $region19: #{tpu_custom_call.1} parent=1 // pred_check_branch
      %208 = sbr.rel (0) target = $region21
    $region20: #{tpu_custom_call.1} parent=1 // pred_region
      %210 = vsyncadd [#allocation4], 0
      %s211 = sshll.u32 [#allocation5], 4
      %s212 = int_to_ptr.vmem [resolvable:$true] %s211
      %s213 = sshll.u32 %s3, 4
      %s214 = int_to_ptr.hbm [resolvable:$true] %s213
      %219 = dma.vmem_to_hbm [thread:$0]  %s212, 256, %s214, [#allocation4], 128, 128, 8
    $region21: #{tpu_custom_call.1} parent=1 // pred_fallthru
      _
    // Predicated region
    $region22: #{tpu_custom_call.1} parent=1 // pred_check
      _
    $region23: #{tpu_custom_call.1} parent=1 // pred_check_branch
      %221 = sbr.rel (0) target = $region25
    $region24: #{tpu_custom_call.1} parent=1 // pred_region
      %223 = dma.done [#allocation4], 256
    $region25: #{tpu_custom_call.1} parent=1 // pred_fallthru
      _
    %224 = vsyncpa [#allocation3], 1
    %225 = vsyncpa [#allocation4], 1

</llo_original>
